<compile_context>
chip_gen: v7x
topology: tpu7x:2x2x1
jax: 0.10.0
libtpu: 0.0.40
codegen_flags: <defaults>
</compile_context>

<pallas_src>
import functools

import jax
import jax.numpy as jnp
from jax import lax
from jax.experimental import pallas as pl
from jax.experimental.pallas import tpu as pltpu

RMS_EPS = 1e-6  # Qwen2RMSNorm eps


def _round_up(x, m):
    return (x + m - 1) // m * m


def _lm_head_topk_kernel(x_ref, g_ref, w_ref, out_ref,
                         xn_sc, max_sc, idx_sc, iota_sc, *, tv, vocab):
    """grid = (row_tiles [parallel], vocab_tiles [arbitrary / reduction])."""
    j = pl.program_id(1)

    # --- init (once per row tile): RMSNorm in f32, reset running max/argmax, hoist iota ---
    @pl.when(j == 0)
    def _():
        x = x_ref[...].astype(jnp.float32)                       # [tm, H]
        var = jnp.mean(x * x, axis=-1, keepdims=True)            # [tm, 1]
        inv = lax.rsqrt(var + RMS_EPS)
        xn = x * inv * g_ref[...].astype(jnp.float32)            # [tm, H] f32
        xn_sc[...] = xn.astype(xn_sc.dtype)                      # cast once to weight dtype
        max_sc[...] = jnp.full_like(max_sc, -jnp.inf)
        idx_sc[...] = jnp.zeros_like(idx_sc)
        iota_sc[...] = lax.broadcasted_iota(jnp.int32, iota_sc.shape, 1)   # [1, tv]

    # --- hot path: matmul over this vocab tile (native [tv, H] layout) + streaming argmax ---
    logits = lax.dot_general(
        xn_sc[...], w_ref[...],
        dimension_numbers=(((1,), (1,)), ((), ())),
        preferred_element_type=jnp.float32)                      # [tm, tv] f32

    col_ids = iota_sc[...] + j * tv                              # [1, tv] global vocab ids
    # mask ragged / padded columns of the last vocab tile
    logits = jnp.where(col_ids < vocab, logits, -jnp.inf)

    local_max = jnp.max(logits, axis=-1, keepdims=True)          # [tm, 1]
    big = jnp.iinfo(jnp.int32).max
    local_idx = jnp.min(jnp.where(logits == local_max, col_ids, big),
                        axis=-1, keepdims=True)                  # [tm, 1] (global index)

    # strict '>' keeps the earliest (lowest-index) occurrence on ties, matching torch.topk(k=1)
    better = local_max > max_sc[...]
    idx_sc[...] = jnp.where(better, local_idx, idx_sc[...])
    max_sc[...] = jnp.where(better, local_max, max_sc[...])

    # --- finalize (last vocab tile of this row tile) ---
    @pl.when(j == pl.num_programs(1) - 1)
    def _():
        out_ref[...] = idx_sc[...]


def lm_head_with_topk(hidden_states, gamma, lm_head_w, *, tv=512, tm=256):
    """hidden_states: [B, S, H] float32; gamma: [H]; lm_head_w: [V, H] in torch Linear layout
    (f32 or bf16 — streamed as-is).  Returns token ids [B, S, 1] int32."""
    B, S, H = hidden_states.shape
    V, Hw = lm_head_w.shape
    assert Hw == H

    w_dtype = lm_head_w.dtype
    compute_dtype = w_dtype if jnp.issubdtype(w_dtype, jnp.floating) else jnp.float32
    # TODO(synk): int8/fp8 lm_head weights need per-output-channel scales applied to the logits
    # tile before the max/argmax; only float (f32/bf16) weights are handled here.

    T = B * S
    tm = _round_up(max(16, min(tm, _round_up(T, 16))), 16)     # sublane-safe for f32 and bf16
    T_pad = _round_up(T, tm)

    tv = _round_up(min(tv, _round_up(V, 128)), 128)            # lane-aligned vocab tile
    n_vtiles = pl.cdiv(V, tv)                                  # ragged last tile masked in-kernel

    x2d = hidden_states.reshape(T, H).astype(jnp.float32)
    if T_pad != T:
        x2d = jnp.pad(x2d, ((0, T_pad - T), (0, 0)))           # activations are tiny; weight untouched
    g2d = gamma.reshape(1, H).astype(jnp.float32)

    kernel = functools.partial(_lm_head_topk_kernel, tv=tv, vocab=V)

    tokens = pl.pallas_call(
        kernel,
        out_shape=jax.ShapeDtypeStruct((T_pad, 1), jnp.int32),
        grid_spec=pltpu.PrefetchScalarGridSpec(
            num_scalar_prefetch=0,
            grid=(T_pad // tm, n_vtiles),
            in_specs=[
                pl.BlockSpec((tm, H), lambda i, j: (i, 0)),    # row tile, resident across vocab axis
                pl.BlockSpec((1, H), lambda i, j: (0, 0)),     # RMSNorm gain
                pl.BlockSpec((tv, H), lambda i, j: (j, 0)),    # native [V, H] weight, contiguous tile
            ],
            out_specs=pl.BlockSpec((tm, 1), lambda i, j: (i, 0)),
            scratch_shapes=[
                pltpu.VMEM((tm, H), compute_dtype),            # normalized x (weight dtype)
                pltpu.VMEM((tm, 1), jnp.float32),              # running max
                pltpu.VMEM((tm, 1), jnp.int32),                # running argmax
                pltpu.VMEM((1, tv), jnp.int32),                # hoisted lane iota
            ],
        ),
        compiler_params=pltpu.CompilerParams(
            dimension_semantics=("parallel", "arbitrary"),
            vmem_limit_bytes=64 * 1024 * 1024,                 # fits v7x (64 MiB/TC) and below
        ),
    )(x2d, g2d, lm_head_w)

    return tokens[:T].reshape(B, S, 1)


def _reference(hidden_states, gamma, lm_head_w):
    x = hidden_states.astype(jnp.float32)
    var = jnp.mean(x * x, axis=-1, keepdims=True)
    xn = x * lax.rsqrt(var + RMS_EPS) * gamma.astype(jnp.float32)
    logits = jnp.dot(xn, lm_head_w.astype(jnp.float32).T, preferred_element_type=jnp.float32)
    return jnp.argmax(logits, axis=-1, keepdims=True).astype(jnp.int32)


if __name__ == "__main__":
    key = jax.random.PRNGKey(0)
    k1, k2, k3 = jax.random.split(key, 3)

    # --- Config A: f32 weights, ragged vocab (V % tv != 0) exercising the in-kernel mask ---
    B, S, H, V = 2, 8, 32, 640
    hidden_states = jax.random.normal(k1, (B, S, H), dtype=jnp.float32)
    gamma = 1.0 + 0.1 * jax.random.normal(k2, (H,), dtype=jnp.float32)
    lm_head_w = 0.05 * jax.random.normal(k3, (V, H), dtype=jnp.float32)   # torch Linear [V, H]

    tokens = lm_head_with_topk(hidden_states, gamma, lm_head_w, tv=512, tm=128)
    jax.block_until_ready(tokens)
    ref = _reference(hidden_states, gamma, lm_head_w)
    assert tokens.shape == (B, S, 1), tokens.shape
    assert jnp.array_equal(tokens, ref), "f32 mismatch vs reference"

    # --- Config B: bf16 weights streamed natively (no in-kernel cast), T not a multiple of tm ---
    B2, S2, H2, V2 = 1, 3, 128, 512
    k4, k5, k6 = jax.random.split(jax.random.PRNGKey(1), 3)
    hs2 = jax.random.normal(k4, (B2, S2, H2), dtype=jnp.float32)
    g2 = 1.0 + 0.1 * jax.random.normal(k5, (H2,), dtype=jnp.float32)
    w2 = (0.05 * jax.random.normal(k6, (V2, H2), dtype=jnp.float32)).astype(jnp.bfloat16)

    tok2 = lm_head_with_topk(hs2, g2, w2, tv=256, tm=16)
    jax.block_until_ready(tok2)
    assert tok2.shape == (B2, S2, 1)
    # robust check (bf16 accumulation order may differ slightly): chosen token must carry the max logit
    x2 = hs2.astype(jnp.float32)
    var2 = jnp.mean(x2 * x2, axis=-1, keepdims=True)
    xn2 = (x2 * lax.rsqrt(var2 + RMS_EPS) * g2).astype(jnp.bfloat16).astype(jnp.float32)
    logits2 = jnp.einsum("bsh,vh->bsv", xn2, w2.astype(jnp.float32))
    chosen = jnp.take_along_axis(logits2, tok2, axis=-1)
    assert bool(jnp.all(chosen >= jnp.max(logits2, axis=-1, keepdims=True) - 1e-3)), "bf16 argmax off"

    print("KERNEL_OK")
</pallas_src>

<mosaic_0001>
module attributes {stable_mosaic.version = 11 : i64} {
  func.func @_lm_head_topk_kernel(%arg0: i32, %arg1: i32, %arg2: memref<16x32xf32, #tpu.memory_space<vmem>>, %arg3: memref<1x32xf32, #tpu.memory_space<vmem>>, %arg4: memref<512x32xf32, #tpu.memory_space<vmem>>, %arg5: memref<16x1xi32, #tpu.memory_space<vmem>>, %arg6: memref<16x32xf32, #tpu.memory_space<vmem>>, %arg7: memref<16x1xf32, #tpu.memory_space<vmem>>, %arg8: memref<16x1xi32, #tpu.memory_space<vmem>>, %arg9: memref<1x512xi32, #tpu.memory_space<vmem>>) attributes {dimension_semantics = [#tpu.dimension_semantics<parallel>, #tpu.dimension_semantics<arbitrary>], iteration_bounds = array<i64: 1, 2>, scalar_prefetch = 0 : i64, scratch_operands = 4 : i64, tpu.core_type = #tpu.core_type<tc>, window_params = [{transform_indices = @transform_0, window_bounds = array<i64: 16, 32>}, {pipeline_mode = #tpu.pipeline_mode<synchronous>, transform_indices = @transform_1, window_bounds = array<i64: 1, 32>}, {transform_indices = @transform_2, window_bounds = array<i64: 512, 32>}, {transform_indices = @transform_3, window_bounds = array<i64: 16, 1>}]} {
    %c0_i32 = arith.constant 0 : i32
    %0 = arith.cmpi eq, %arg1, %c0_i32 : i32
    %1 = arith.extui %0 : i1 to i32
    %c0_i32_0 = arith.constant 0 : i32
    %2 = arith.cmpi ne, %1, %c0_i32_0 : i32
    scf.if %2 {
      %c0_20 = arith.constant 0 : index
      %c0_21 = arith.constant 0 : index
      %37 = vector.load %arg2[%c0_20, %c0_21] : memref<16x32xf32, #tpu.memory_space<vmem>>, vector<16x32xf32>
      %38 = arith.mulf %37, %37 : vector<16x32xf32>
      %cst_22 = arith.constant dense<0.000000e+00> : vector<16xf32>
      %39 = vector.multi_reduction <add>, %38, %cst_22 [1] : vector<16x32xf32> to vector<16xf32>
      %40 = vector.shape_cast %39 : vector<16xf32> to vector<16x1xf32>
      %cst_23 = arith.constant 3.200000e+01 : f32
      %41 = vector.broadcast %cst_23 : f32 to vector<16x1xf32>
      %42 = arith.divf %40, %41 : vector<16x1xf32>
      %cst_24 = arith.constant 9.99999997E-7 : f32
      %43 = vector.broadcast %cst_24 : f32 to vector<16x1xf32>
      %44 = arith.addf %42, %43 : vector<16x1xf32>
      %45 = math.rsqrt %44 : vector<16x1xf32>
      %46 = vector.broadcast %45 : vector<16x1xf32> to vector<16x32xf32>
      %47 = arith.mulf %37, %46 : vector<16x32xf32>
      %c0_25 = arith.constant 0 : index
      %c0_26 = arith.constant 0 : index
      %48 = vector.load %arg3[%c0_25, %c0_26] : memref<1x32xf32, #tpu.memory_space<vmem>>, vector<1x32xf32>
      %49 = vector.broadcast %48 : vector<1x32xf32> to vector<16x32xf32>
      %50 = arith.mulf %47, %49 : vector<16x32xf32>
      %c0_27 = arith.constant 0 : index
      %c0_28 = arith.constant 0 : index
      %51 = vector.load %arg6[%c0_27, %c0_28] : memref<16x32xf32, #tpu.memory_space<vmem>>, vector<16x32xf32>
      tpu.vector_store %arg6[%c0_27, %c0_28], %50 {strides = array<i32>} : memref<16x32xf32, #tpu.memory_space<vmem>>, vector<16x32xf32>,
      %cst_29 = arith.constant 0xFF800000 : f32
      %52 = vector.broadcast %cst_29 : f32 to vector<16x1xf32>
      %c0_30 = arith.constant 0 : index
      %c0_31 = arith.constant 0 : index
      %53 = vector.load %arg7[%c0_30, %c0_31] : memref<16x1xf32, #tpu.memory_space<vmem>>, vector<16x1xf32>
      tpu.vector_store %arg7[%c0_30, %c0_31], %52 {strides = array<i32>} : memref<16x1xf32, #tpu.memory_space<vmem>>, vector<16x1xf32>,
      %c0_i32_32 = arith.constant 0 : i32
      %54 = vector.broadcast %c0_i32_32 : i32 to vector<16x1xi32>
      %c0_33 = arith.constant 0 : index
      %c0_34 = arith.constant 0 : index
      %55 = vector.load %arg8[%c0_33, %c0_34] : memref<16x1xi32, #tpu.memory_space<vmem>>, vector<16x1xi32>
      tpu.vector_store %arg8[%c0_33, %c0_34], %54 {strides = array<i32>} : memref<16x1xi32, #tpu.memory_space<vmem>>, vector<16x1xi32>,
      %56 = tpu.iota {dimensions = array<i32: 1>} : vector<1x512xi32>
      %c0_35 = arith.constant 0 : index
      %c0_36 = arith.constant 0 : index
      %57 = vector.load %arg9[%c0_35, %c0_36] : memref<1x512xi32, #tpu.memory_space<vmem>>, vector<1x512xi32>
      tpu.vector_store %arg9[%c0_35, %c0_36], %56 {strides = array<i32>} : memref<1x512xi32, #tpu.memory_space<vmem>>, vector<1x512xi32>,
    } else {
    }
    %c0 = arith.constant 0 : index
    %c0_1 = arith.constant 0 : index
    %3 = vector.load %arg6[%c0, %c0_1] : memref<16x32xf32, #tpu.memory_space<vmem>>, vector<16x32xf32>
    %c0_2 = arith.constant 0 : index
    %c0_3 = arith.constant 0 : index
    %4 = vector.load %arg4[%c0_2, %c0_3] : memref<512x32xf32, #tpu.memory_space<vmem>>, vector<512x32xf32>
    %cst = arith.constant dense<0.000000e+00> : vector<16x512xf32>
    %5 = tpu.matmul %3, %4, %cst {dimension_numbers = #tpu.dot_dimension_numbers<[1], [1], [0], [0], [0, 0, 1, 0], [], []>} : vector<16x32xf32>, vector<512x32xf32>, vector<16x512xf32> -> vector<16x512xf32>
    %c0_4 = arith.constant 0 : index
    %c0_5 = arith.constant 0 : index
    %6 = vector.load %arg9[%c0_4, %c0_5] : memref<1x512xi32, #tpu.memory_space<vmem>>, vector<1x512xi32>
    %c512_i32 = arith.constant 512 : i32
    %7 = arith.muli %arg1, %c512_i32 : i32
    %8 = vector.broadcast %7 : i32 to vector<1x512xi32>
    %9 = arith.addi %6, %8 : vector<1x512xi32>
    %c640_i32 = arith.constant 640 : i32
    %10 = vector.broadcast %c640_i32 : i32 to vector<1x512xi32>
    %11 = arith.cmpi slt, %9, %10 : vector<1x512xi32>
    %cst_6 = arith.constant 0xFF800000 : f32
    %12 = vector.shape_cast %11 : vector<1x512xi1> to vector<1x512xi1>
    %13 = vector.broadcast %12 : vector<1x512xi1> to vector<16x512xi1>
    %14 = vector.broadcast %cst_6 : f32 to vector<16x512xf32>
    %15 = arith.select %13, %5, %14 : vector<16x512xi1>, vector<16x512xf32>
    %cst_7 = arith.constant dense<0xFF800000> : vector<16xf32>
    %16 = vector.multi_reduction <maximumf>, %15, %cst_7 [1] : vector<16x512xf32> to vector<16xf32>
    %17 = vector.shape_cast %16 : vector<16xf32> to vector<16x1xf32>
    %18 = vector.broadcast %17 : vector<16x1xf32> to vector<16x512xf32>
    %19 = arith.cmpf oeq, %15, %18 : vector<16x512xf32>
    %c2147483647_i32 = arith.constant 2147483647 : i32
    %20 = vector.shape_cast %9 : vector<1x512xi32> to vector<1x512xi32>
    %21 = vector.broadcast %20 : vector<1x512xi32> to vector<16x512xi32>
    %22 = vector.broadcast %c2147483647_i32 : i32 to vector<16x512xi32>
    %23 = arith.select %19, %21, %22 : vector<16x512xi1>, vector<16x512xi32>
    %cst_8 = arith.constant dense<2147483647> : vector<16xi32>
    %24 = vector.multi_reduction <minsi>, %23, %cst_8 [1] : vector<16x512xi32> to vector<16xi32>
    %25 = vector.shape_cast %24 : vector<16xi32> to vector<16x1xi32>
    %c0_9 = arith.constant 0 : index
    %c0_10 = arith.constant 0 : index
    %26 = vector.load %arg7[%c0_9, %c0_10] : memref<16x1xf32, #tpu.memory_space<vmem>>, vector<16x1xf32>
    %27 = arith.cmpf ogt, %17, %26 : vector<16x1xf32>
    %c0_11 = arith.constant 0 : index
    %c0_12 = arith.constant 0 : index
    %28 = vector.load %arg8[%c0_11, %c0_12] : memref<16x1xi32, #tpu.memory_space<vmem>>, vector<16x1xi32>
    %29 = arith.select %27, %25, %28 : vector<16x1xi1>, vector<16x1xi32>
    %c0_13 = arith.constant 0 : index
    %c0_14 = arith.constant 0 : index
    %30 = vector.load %arg8[%c0_13, %c0_14] : memref<16x1xi32, #tpu.memory_space<vmem>>, vector<16x1xi32>
    tpu.vector_store %arg8[%c0_13, %c0_14], %29 {strides = array<i32>} : memref<16x1xi32, #tpu.memory_space<vmem>>, vector<16x1xi32>,
    %c0_15 = arith.constant 0 : index
    %c0_16 = arith.constant 0 : index
    %31 = vector.load %arg7[%c0_15, %c0_16] : memref<16x1xf32, #tpu.memory_space<vmem>>, vector<16x1xf32>
    %32 = arith.select %27, %17, %31 : vector<16x1xi1>, vector<16x1xf32>
    %c0_17 = arith.constant 0 : index
    %c0_18 = arith.constant 0 : index
    %33 = vector.load %arg7[%c0_17, %c0_18] : memref<16x1xf32, #tpu.memory_space<vmem>>, vector<16x1xf32>
    tpu.vector_store %arg7[%c0_17, %c0_18], %32 {strides = array<i32>} : memref<16x1xf32, #tpu.memory_space<vmem>>, vector<16x1xf32>,
    %c1_i32 = arith.constant 1 : i32
    %34 = arith.cmpi eq, %arg1, %c1_i32 : i32
    %35 = arith.extui %34 : i1 to i32
    %c0_i32_19 = arith.constant 0 : i32
    %36 = arith.cmpi ne, %35, %c0_i32_19 : i32
    scf.if %36 {
      %c0_20 = arith.constant 0 : index
      %c0_21 = arith.constant 0 : index
      %37 = vector.load %arg8[%c0_20, %c0_21] : memref<16x1xi32, #tpu.memory_space<vmem>>, vector<16x1xi32>
      %c0_22 = arith.constant 0 : index
      %c0_23 = arith.constant 0 : index
      %38 = vector.load %arg5[%c0_22, %c0_23] : memref<16x1xi32, #tpu.memory_space<vmem>>, vector<16x1xi32>
      tpu.vector_store %arg5[%c0_22, %c0_23], %37 {strides = array<i32>} : memref<16x1xi32, #tpu.memory_space<vmem>>, vector<16x1xi32>,
    } else {
    }
    return
  }
  func.func @transform_0(%arg0: i32, %arg1: i32) -> (i32, i32) {
    %c0_i32 = arith.constant 0 : i32
    %c0_i32_0 = arith.constant 0 : i32
    return %arg0, %c0_i32 : i32, i32
  }
  func.func @transform_1(%arg0: i32, %arg1: i32) -> (i32, i32) {
    %c0_i32 = arith.constant 0 : i32
    %c0_i32_0 = arith.constant 0 : i32
    %c0_i32_1 = arith.constant 0 : i32
    return %c0_i32, %c0_i32_0 : i32, i32
  }
  func.func @transform_2(%arg0: i32, %arg1: i32) -> (i32, i32) {
    %c0_i32 = arith.constant 0 : i32
    %c0_i32_0 = arith.constant 0 : i32
    return %arg1, %c0_i32 : i32, i32
  }
  func.func @transform_3(%arg0: i32, %arg1: i32) -> (i32, i32) {
    %c0_i32 = arith.constant 0 : i32
    %c0_i32_0 = arith.constant 0 : i32
    return %arg0, %c0_i32 : i32, i32
  }
}

</mosaic_0001>

<llo_original>
// kernel: tpu_custom_call.1
$region0: #{tpu_custom_call.1}
  #allocation0 [shape = 'u32[]', space=smem, size = 0x4, offset = 0x4, fixed_abs, tag = 'smem constant byte address 0x4 - core index']
  #allocation1 [shape = 'u32[144,128]{1,0:T(1,128)}', space=vmem, size = 0x12000, scoped, tag = 'internal scratch']
  #allocation2 [shape = 'f32[16,32]{1,0:T(8,128)}', space=vmem, size = 0x2000, scoped, tag = 'scratch operand']
  #allocation3 [shape = 'f32[16,1]{1,0:T(8,128)}', space=vmem, size = 0x2000, scoped, tag = 'scratch operand']
  #allocation4 [shape = 's32[16,1]{1,0:T(8,128)}', space=vmem, size = 0x2000, scoped, tag = 'scratch operand']
  #allocation5 [shape = 's32[1,512]{1,0:T(1,128)}', space=vmem, size = 0x800, scoped, tag = 'scratch operand']
  %s0 = inlined_call_operand.hbm [shape: f32[16,32], index: 0, kind: input, shape index: {}]
  %s1 = inlined_call_operand.hbm [shape: f32[1,32], index: 1, kind: input, shape index: {}]
  %s2 = inlined_call_operand.hbm [shape: f32[640,32], index: 2, kind: input, shape index: {}]
  %s3 = inlined_call_operand.hbm [shape: s32[16,1], index: 3, kind: output, shape index: {}]
  %s4 = sld [smem:[#allocation0]]
  $region65: #{tpu_custom_call.1} parent=0
    _
  %s6 = ssub.s32 1, %s4
  %s7 = scalar_select 0, %s6, %s4
  $region1: #{tpu_custom_call.1} parent=0
    #allocation6 [shape = 'u8[8192]{0}', space=vmem, size = 0x2000, scoped, tag = 'input window, operand 0, single buffered']
    #allocation7 [shape = 's32[2]{0}', space=sflag, size = 0x8, scoped, tag = 'scoped memory for tpu_custom_call.1']
    #allocation8 [shape = 's32[2]{0}', space=sflag, size = 0x8, scoped, tag = 'scoped memory for tpu_custom_call.1']
    #allocation9 [shape = 'u8[512]{0}', space=vmem, size = 0x400, scoped, tag = 'input window, operand 1, single buffered']
    #allocation10 [shape = 's32[1]{0}', space=sflag, size = 0x4, scoped, tag = 'scoped memory for tpu_custom_call.1']
    #allocation11 [shape = 'u8[524288]{0}', space=vmem, size = 0x80000, scoped, tag = 'input window, operand 2']
    #allocation12 [shape = 'u8[8192]{0}', space=vmem, size = 0x2000, scoped, tag = 'output window, operand 0, single buffered']
    %8 = vsyncpa [#allocation7], 0
    %9 = vsyncpa [#allocation10], 0
    %10 = vsyncpa [#allocation8], 0
    loop: start=0, step=1, limit=4
    $region2: #{tpu_custom_call.1} parent=1 // loop_pre_header
      _
    $region3: #{tpu_custom_call.1} parent=1 // loop_header
      %s12 = sphi 0, %s16
      %p13 = scmp.ge.s32.totalorder %s12, 4
      %s19 = sphi 0, %s31
      %s20 = sphi 0, %s27
      %s21 = sphi 0, %s19
      %s22 = sphi 0, %s20
      %s23 = sphi 0, %s21
      %s24 = sphi 0, %s22
      %s34 = sphi 0, %s36
      %s37 = sphi 0, %s34
      %s38 = sphi 0, %s37
      %s54 = sphi 0, %s38
      %s58 = sphi 0, %s58
      %s60 = sphi 0, %s58
      %s61 = sphi 0, %s60
      %s75 = sphi 0, %s61
      %s81 = sphi 0, %s83
      %s84 = sphi 0, %s81
      %s85 = sphi 0, %s84
      %s101 = sphi 0, %s85
      %s107 = sphi 0, %s109
      %s110 = sphi 0, %s107
      %s111 = sphi 0, %s110
      %s127 = sphi 0, %s111
    $region4: #{tpu_custom_call.1} parent=1 // loop_header_branch
      %15 = sbr.rel (%p13) target = $region8
    $region5: #{tpu_custom_call.1} parent=1 // loop_body
      %s17 = ssub.s32 %s12, 1
      %s18 = ssub.s32 %s12, 2
      %s25 = sadd.s32 1, %s20
      %p26 = scmp.ge.s32.totalorder %s25, 2
      %s27 = scalar_select %p26, 0, %s25
      %s28 = sadd.s32 1, %s19
      %s29 = scalar_select %p26, %s28, %s19
      %p30 = scmp.ge.s32.totalorder %s29, 1
      %s31 = scalar_select %p30, 0, %s29
      %s32 = ssub.s32 %s19, %s31
      %p33 = scmp.eq.s32.totalorder %s32, 0
      %s35 = sadd.s32 %s34, 1
      %s36 = scalar_select %p33, %s34, %s35
      %p39 = pneg %p33
      %p40 = scmp.eq.s32.totalorder %s12, 1
      %p41 = por %p39, %p40
      %p42 = scmp.ne.s32.totalorder %s34, %s37
      %p43 = scmp.eq.s32.totalorder %s12, 0
      %p44 = por %p42, %p43
      %p45 = scmp.ne.s32.totalorder %s34, %s37
      %p46 = scmp.eq.s32.totalorder %s17, 1
      %p47 = por %p45, %p46
      %p48 = scmp.ne.s32.totalorder %s37, %s38
      %p49 = scmp.eq.s32.totalorder %s17, 0
      %p50 = por %p48, %p49
      %p51 = scmp.ne.s32.totalorder %s37, %s38
      %p52 = scmp.eq.s32.totalorder %s18, 1
      %p53 = por %p51, %p52
      %p55 = scmp.ne.s32.totalorder %s38, %s54
      %p56 = scmp.eq.s32.totalorder %s18, 0
      %p57 = por %p55, %p56
      %s59 = sadd.s32 %s58, 1
      %p62 = scmp.eq.s32.totalorder %s12, 1
      %p63 = scmp.ne.s32.totalorder %s58, %s60
      %p64 = scmp.eq.s32.totalorder %s12, 0
      %p65 = por %p63, %p64
      %p66 = scmp.ne.s32.totalorder %s58, %s60
      %p67 = scmp.eq.s32.totalorder %s17, 1
      %p68 = por %p66, %p67
      %p69 = scmp.ne.s32.totalorder %s60, %s61
      %p70 = scmp.eq.s32.totalorder %s17, 0
      %p71 = por %p69, %p70
      %p72 = scmp.ne.s32.totalorder %s60, %s61
      %p73 = scmp.eq.s32.totalorder %s18, 1
      %p74 = por %p72, %p73
      %p76 = scmp.ne.s32.totalorder %s61, %s75
      %p77 = scmp.eq.s32.totalorder %s18, 0
      %p78 = por %p76, %p77
      %s79 = ssub.s32 %s20, %s27
      %p80 = scmp.eq.s32.totalorder %s79, 0
      %s82 = sadd.s32 %s81, 1
      %s83 = scalar_select %p80, %s81, %s82
      %p86 = pneg %p80
      %p87 = scmp.eq.s32.totalorder %s12, 1
      %p88 = por %p86, %p87
      %p89 = scmp.ne.s32.totalorder %s81, %s84
      %p90 = scmp.eq.s32.totalorder %s12, 0
      %p91 = por %p89, %p90
      %p92 = scmp.ne.s32.totalorder %s81, %s84
      %p93 = scmp.eq.s32.totalorder %s17, 1
      %p94 = por %p92, %p93
      %p95 = scmp.ne.s32.totalorder %s84, %s85
      %p96 = scmp.eq.s32.totalorder %s17, 0
      %p97 = por %p95, %p96
      %p98 = scmp.ne.s32.totalorder %s84, %s85
      %p99 = scmp.eq.s32.totalorder %s18, 1
      %p100 = por %p98, %p99
      %p102 = scmp.ne.s32.totalorder %s85, %s101
      %p103 = scmp.eq.s32.totalorder %s18, 0
      %p104 = por %p102, %p103
      %s105 = ssub.s32 %s19, %s31
      %p106 = scmp.eq.s32.totalorder %s105, 0
      %s108 = sadd.s32 %s107, 1
      %s109 = scalar_select %p106, %s107, %s108
      %p112 = pneg %p106
      %p113 = scmp.eq.s32.totalorder %s12, 1
      %p114 = por %p112, %p113
      %p115 = scmp.ne.s32.totalorder %s107, %s110
      %p116 = scmp.eq.s32.totalorder %s12, 0
      %p117 = por %p115, %p116
      %p118 = scmp.ne.s32.totalorder %s107, %s110
      %p119 = scmp.eq.s32.totalorder %s17, 1
      %p120 = por %p118, %p119
      %p121 = scmp.ne.s32.totalorder %s110, %s111
      %p122 = scmp.eq.s32.totalorder %s17, 0
      %p123 = por %p121, %p122
      %p124 = scmp.ne.s32.totalorder %s110, %s111
      %p125 = scmp.eq.s32.totalorder %s18, 1
      %p126 = por %p124, %p125
      %p128 = scmp.ne.s32.totalorder %s111, %s127
      %p129 = scmp.eq.s32.totalorder %s18, 0
      %p130 = por %p128, %p129
      %p131 = scmp.le.s32.totalorder 1, %s12
      %p132 = scmp.lt.s32.totalorder %s12, 3
      %p133 = pnand %p131, %p132
      %p134 = pneg %p133
      // Predicated region
      $region9: #{tpu_custom_call.1} parent=5 // pred_check
        _
      $region10: #{tpu_custom_call.1} parent=5 // pred_check_branch
        %136 = sbr.rel (%p133) target = $region12
      $region11: #{tpu_custom_call.1} parent=5 // pred_region
        %s137 = ssub.s32 %s12, 1
        // Predicated region
        $region13: #{tpu_custom_call.1} parent=11 // pred_check
          %p138 = pneg %p50
        $region14: #{tpu_custom_call.1} parent=11 // pred_check_branch
          %140 = sbr.rel (%p138) target = $region16
        $region15: #{tpu_custom_call.1} parent=11 // pred_region
          %s141 = smul.u32 2, %s21
          %s143 = ssub.s32 256, 256
          %144 = vsyncadd [#allocation7], %s143
          %s145 = smul.addr %s141, 128
          %s146 = scalar_lea.hbm %s0, %s145
          %s147 = sshll.u32 [#allocation6], 4
          %s148 = int_to_ptr.vmem [resolvable:$true] %s147
          %153 = dma.hbm_to_vmem [thread:$0]  %s146, 256, %s148, [#allocation7], 128, 128, 8
        $region16: #{tpu_custom_call.1} parent=11 // pred_fallthru
          _
        // Predicated region
        $region17: #{tpu_custom_call.1} parent=11 // pred_check
          %p154 = pneg %p71
        $region18: #{tpu_custom_call.1} parent=11 // pred_check_branch
          %156 = sbr.rel (%p154) target = $region20
        $region19: #{tpu_custom_call.1} parent=11 // pred_region
          %s158 = ssub.s32 16, 16
          %159 = vsyncadd [#allocation10], %s158
          %s161 = sshll.u32 [#allocation9], 4
          %s162 = int_to_ptr.vmem [resolvable:$true] %s161
          %164 = dma.hbm_to_vmem [thread:$0]  %s1, 16, %s162, [#allocation10]
        $region20: #{tpu_custom_call.1} parent=11 // pred_fallthru
          _
      $region12: #{tpu_custom_call.1} parent=5 // pred_fallthru
        _
      %p165 = scmp.lt.s32.totalorder %s12, 2
      // Predicated region
      $region21: #{tpu_custom_call.1} parent=5 // pred_check
        %p166 = pneg %p165
      $region22: #{tpu_custom_call.1} parent=5 // pred_check_branch
        %168 = sbr.rel (%p166) target = $region24
      $region23: #{tpu_custom_call.1} parent=5 // pred_region
        // Predicated region
        $region25: #{tpu_custom_call.1} parent=23 // pred_check
          %p169 = pneg %p91
        $region26: #{tpu_custom_call.1} parent=23 // pred_check_branch
          %171 = sbr.rel (%p169) target = $region28
        $region27: #{tpu_custom_call.1} parent=23 // pred_region
          %s172 = sand.u32 %s12, 1
          %s173 = scalar_lea.sflag [#allocation7], %s172
          %s174 = sand.u32 %s81, 1
          %s175 = smul.addr %s174, 512
          %s176 = scalar_lea.vmem [#allocation11], %s175
          %s177 = smul.u32 64, %s20
          %s178 = ssub.s32 80, %s177
          %p179 = scmp.lt.s32.totalorder %s178, 64
          %s180 = scalar_select %p179, %s178, 64
          %s181 = smul.u32 128, %s180
          %s183 = ssub.s32 8192, %s181
          %184 = vsyncadd %s173, %s183
          %p185 = scmp.ne.s32.totalorder 0, %s181
          %s186 = smul.addr %s177, 128
          %s187 = scalar_lea.hbm %s2, %s186
          %s188 = smul.u32 8, %s180
          %s189 = sshll.u32 %s176, 4
          %s190 = int_to_ptr.vmem [resolvable:$true] %s189
          %s191 = sshll.u32 %s188, 4
          %195 = dma.hbm_to_vmem [thread:$0]  (%p185), %s187, %s191, %s190, %s173, 128, 128, 8
        $region28: #{tpu_custom_call.1} parent=23 // pred_fallthru
          _
      $region24: #{tpu_custom_call.1} parent=5 // pred_fallthru
        _
      %p196 = scmp.le.s32.totalorder 1, %s12
      %p197 = scmp.lt.s32.totalorder %s12, 3
      %p198 = pnand %p196, %p197
      %p199 = pneg %p198
      // Predicated region
      $region29: #{tpu_custom_call.1} parent=5 // pred_check
        _
      $region30: #{tpu_custom_call.1} parent=5 // pred_check_branch
        %201 = sbr.rel (%p198) target = $region32
      $region31: #{tpu_custom_call.1} parent=5 // pred_region
        %s202 = ssub.s32 %s12, 1
        // Predicated region
        $region33: #{tpu_custom_call.1} parent=31 // pred_check
          %p203 = pneg %p50
        $region34: #{tpu_custom_call.1} parent=31 // pred_check_branch
          %205 = sbr.rel (%p203) target = $region36
        $region35: #{tpu_custom_call.1} parent=31 // pred_region
          %206 = dma.done [#allocation7], 256
        $region36: #{tpu_custom_call.1} parent=31 // pred_fallthru
          _
        // Predicated region
        $region37: #{tpu_custom_call.1} parent=31 // pred_check
          %p207 = pneg %p71
        $region38: #{tpu_custom_call.1} parent=31 // pred_check_branch
          %209 = sbr.rel (%p207) target = $region40
        $region39: #{tpu_custom_call.1} parent=31 // pred_region
          %210 = dma.done [#allocation10], 16
        $region40: #{tpu_custom_call.1} parent=31 // pred_fallthru
          _
        %s211 = sand.u32 %s17, 1
        %s212 = scalar_lea.sflag [#allocation7], %s211
        %s213 = sand.u32 %s84, 1
        %s214 = smul.addr %s213, 512
        %s215 = scalar_lea.vmem [#allocation11], %s214
        // Predicated region
        $region41: #{tpu_custom_call.1} parent=31 // pred_check
          %p216 = pneg %p97
        $region42: #{tpu_custom_call.1} parent=31 // pred_check_branch
          %218 = sbr.rel (%p216) target = $region44
        $region43: #{tpu_custom_call.1} parent=31 // pred_region
          %219 = dma.done %s212, 8192
        $region44: #{tpu_custom_call.1} parent=31 // pred_fallthru
          _
        %p220 = pneg %p50
        %p221 = pneg %p47
        %p222 = pneg %p71
        %p223 = pneg %p68
        %s224 = sand.u32 %s17, 1
        %s225 = scalar_lea.sflag [#allocation7], %s224
        %s226 = sand.u32 %s84, 1
        %s227 = smul.addr %s226, 512
        %s228 = scalar_lea.vmem [#allocation11], %s227
        %p229 = pneg %p97
        %p230 = pneg %p94
        %p231 = pneg %p123
        %p232 = pneg %p120
        %s233 = smul.u32 2, %s21
        %s234 = smul.u32 64, %s22
        %s235 = ssub.s32 80, %s234
        %p236 = scmp.lt.s32.totalorder %s235, 64
        %s237 = scalar_select %p236, %s235, 64
        %s238 = smul.u32 128, %s237
        %s239 = smul.u32 2, %s21
        %p240 = scmp.eq.s32.totalorder %s22, 0
        // Predicated region
        $region45: #{tpu_custom_call.1} parent=31 // pred_check
          %p241 = pneg %p240
        $region46: #{tpu_custom_call.1} parent=31 // pred_check_branch
          %243 = sbr.rel (%p241) target = $region48
        $region47: #{tpu_custom_call.1} parent=31 // pred_region
          %v244 = vld [vmem:[#allocation6] sm:$0xff]
          %v245 = vld [vmem:[#allocation6 + $0x8] sm:$0xff]
          %v246 = vmul.f32 %v244, %v244
          %v247 = vmul.f32 %v245, %v245
          %vm248 = vcmask 261120
          %v249 = vsel %vm248, %v246, 0.0
          %250 = vadd.xlane.f32.xlu0 %v249
          %v251 = vpop.xlane.xlu0 %250
          %v252 = vsel %vm248, %v247, 0.0
          %253 = vadd.xlane.f32.xlu0 %v252
          %v254 = vpop.xlane.xlu0 %253
          %v255 = vrcp.pop 32.0
          %v256 = vmul.f32 %v251, %v255
          %v257 = vmul.f32 %v254, %v255
          %v258 = vadd.f32 %v256, 1e-06
          %v259 = vadd.f32 %v257, 1e-06
          %v260 = vrsqrt.pop %v258
          %v261 = vrsqrt.pop %v259
          %v262 = vmul.f32 %v244, %v260
          %v263 = vmul.f32 %v245, %v261
          %v264 = vld [vmem:[#allocation9] sm:$0x1]
          %v266 = vlaneseq
          %v267 = vshrl.u32 %v266, 7
          %v268 = vsub.s32 0, %v267
          %v269 = vrot.slane %v264, %v268
          %v271 = vmul.f32 %v262, %v269
          %v272 = vmul.f32 %v263, %v269
          %273 = vst.msk [vmem:[#allocation2] sm:$0xff] %vm248, %v271
          %274 = vst.msk [vmem:[#allocation2 + $0x8] sm:$0xff] %vm248, %v272
          %vm275 = vcmask 7168
          %276 = vst.msk [vmem:[#allocation3] sm:$0xff] %vm275, -inf
          %277 = vst.msk [vmem:[#allocation3 + $0x8] sm:$0xff] %vm275, -inf
          %278 = vst.msk [vmem:[#allocation4] sm:$0xff] %vm275, 0
          %279 = vst.msk [vmem:[#allocation4 + $0x8] sm:$0xff] %vm275, 0
          %v280 = vlaneseq
          %v281 = vand.u32 %v280, 127
          %v282 = vadd.s32 %v281, 128
          %v283 = vadd.s32 %v281, 256
          %v284 = vadd.s32 %v281, 384
          %v285 = vcombine.low %v281, %v282
          %v286 = vcombine.low %v283, %v284
          %v288 = vunpack.c.l.s4 1966171168
          %v289 = vunpack.c.0.s8 %v288
          %v290 = vlaneseq
          %v291 = vshrl.u32 %v290, 7
          %v292 = vsub.s32 %v289, %v291
          %v293 = vrot.slane %v285, %v292
          %v295 = vunpack.c.l.s4 1966171168
          %v296 = vunpack.c.0.s8 %v295
          %v297 = vlaneseq
          %v298 = vshrl.u32 %v297, 7
          %v299 = vsub.s32 %v296, %v298
          %v300 = vrot.slane %v286, %v299
          %v301 = vcombine.low %v293, %v300
          %v303 = vunpack.c.l.s4 1966171168
          %v304 = vunpack.c.0.s8 %v303
          %v305 = vlaneseq
          %v306 = vshrl.u32 %v305, 7
          %v307 = vsub.s32 %v304, %v306
          %v308 = vrot.slane %v301, %v307
          %v309 = vlaneseq
          %vm310 = vcmp.ge.s32.totalorder %v309, 0
          %vm311 = vcmp.lt.s32.totalorder %v309, 512
          %vm312 = vmand %vm310, %vm311
          %313 = vst.msk [vmem:[#allocation5] sm:$0xf] %vm312, %v308
        $region48: #{tpu_custom_call.1} parent=31 // pred_fallthru
          _
        %v314 = vld [vmem:[#allocation2] sm:$0xff]
        %v315 = vld [vmem:[#allocation2 + $0x8] sm:$0xff]
        %v316 = vld [vmem:[%s215] sm:$0xff]
        %v317 = vld [vmem:[%s215 + $0x8] sm:$0xff]
        %v318 = vld [vmem:[%s215 + $0x10] sm:$0xff]
        %v319 = vld [vmem:[%s215 + $0x18] sm:$0xff]
        %v320 = vld [vmem:[%s215 + $0x20] sm:$0xff]
        %v321 = vld [vmem:[%s215 + $0x28] sm:$0xff]
        %v322 = vld [vmem:[%s215 + $0x30] sm:$0xff]
        %v323 = vld [vmem:[%s215 + $0x38] sm:$0xff]
        %v324 = vld [vmem:[%s215 + $0x40] sm:$0xff]
        %v325 = vld [vmem:[%s215 + $0x48] sm:$0xff]
        %v326 = vld [vmem:[%s215 + $0x50] sm:$0xff]
        %v327 = vld [vmem:[%s215 + $0x58] sm:$0xff]
        %v328 = vld [vmem:[%s215 + $0x60] sm:$0xff]
        %v329 = vld [vmem:[%s215 + $0x68] sm:$0xff]
        %v330 = vld [vmem:[%s215 + $0x70] sm:$0xff]
        %v331 = vld [vmem:[%s215 + $0x78] sm:$0xff]
        %v332 = vld [vmem:[%s215 + $0x80] sm:$0xff]
        %v333 = vld [vmem:[%s215 + $0x88] sm:$0xff]
        %v334 = vld [vmem:[%s215 + $0x90] sm:$0xff]
        %v335 = vld [vmem:[%s215 + $0x98] sm:$0xff]
        %v336 = vld [vmem:[%s215 + $0xa0] sm:$0xff]
        %v337 = vld [vmem:[%s215 + $0xa8] sm:$0xff]
        %v338 = vld [vmem:[%s215 + $0xb0] sm:$0xff]
        %v339 = vld [vmem:[%s215 + $0xb8] sm:$0xff]
        %v340 = vld [vmem:[%s215 + $0xc0] sm:$0xff]
        %v341 = vld [vmem:[%s215 + $0xc8] sm:$0xff]
        %v342 = vld [vmem:[%s215 + $0xd0] sm:$0xff]
        %v343 = vld [vmem:[%s215 + $0xd8] sm:$0xff]
        %v344 = vld [vmem:[%s215 + $0xe0] sm:$0xff]
        %v345 = vld [vmem:[%s215 + $0xe8] sm:$0xff]
        %v346 = vld [vmem:[%s215 + $0xf0] sm:$0xff]
        %v347 = vld [vmem:[%s215 + $0xf8] sm:$0xff]
        %v348 = vld [vmem:[%s215 + $0x100] sm:$0xff]
        %v349 = vld [vmem:[%s215 + $0x108] sm:$0xff]
        %v350 = vld [vmem:[%s215 + $0x110] sm:$0xff]
        %v351 = vld [vmem:[%s215 + $0x118] sm:$0xff]
        %v352 = vld [vmem:[%s215 + $0x120] sm:$0xff]
        %v353 = vld [vmem:[%s215 + $0x128] sm:$0xff]
        %v354 = vld [vmem:[%s215 + $0x130] sm:$0xff]
        %v355 = vld [vmem:[%s215 + $0x138] sm:$0xff]
        %v356 = vld [vmem:[%s215 + $0x140] sm:$0xff]
        %v357 = vld [vmem:[%s215 + $0x148] sm:$0xff]
        %v358 = vld [vmem:[%s215 + $0x150] sm:$0xff]
        %v359 = vld [vmem:[%s215 + $0x158] sm:$0xff]
        %v360 = vld [vmem:[%s215 + $0x160] sm:$0xff]
        %v361 = vld [vmem:[%s215 + $0x168] sm:$0xff]
        %v362 = vld [vmem:[%s215 + $0x170] sm:$0xff]
        %v363 = vld [vmem:[%s215 + $0x178] sm:$0xff]
        %v364 = vld [vmem:[%s215 + $0x180] sm:$0xff]
        %v365 = vld [vmem:[%s215 + $0x188] sm:$0xff]
        %v366 = vld [vmem:[%s215 + $0x190] sm:$0xff]
        %v367 = vld [vmem:[%s215 + $0x198] sm:$0xff]
        %v368 = vld [vmem:[%s215 + $0x1a0] sm:$0xff]
        %v369 = vld [vmem:[%s215 + $0x1a8] sm:$0xff]
        %v370 = vld [vmem:[%s215 + $0x1b0] sm:$0xff]
        %v371 = vld [vmem:[%s215 + $0x1b8] sm:$0xff]
        %v372 = vld [vmem:[%s215 + $0x1c0] sm:$0xff]
        %v373 = vld [vmem:[%s215 + $0x1c8] sm:$0xff]
        %v374 = vld [vmem:[%s215 + $0x1d0] sm:$0xff]
        %v375 = vld [vmem:[%s215 + $0x1d8] sm:$0xff]
        %v376 = vld [vmem:[%s215 + $0x1e0] sm:$0xff]
        %v377 = vld [vmem:[%s215 + $0x1e8] sm:$0xff]
        %v378 = vld [vmem:[%s215 + $0x1f0] sm:$0xff]
        %v379 = vld [vmem:[%s215 + $0x1f8] sm:$0xff]
        %vm380 = vcmask 261120
        %v382 = vsel %vm380, %v314, 0
        %v385 = vsel %vm380, %v315, 0
        %v388 = vsel %vm380, %v316, 0
        %v391 = vsel %vm380, %v317, 0
        %v394 = vsel %vm380, %v318, 0
        %v397 = vsel %vm380, %v319, 0
        %v400 = vsel %vm380, %v320, 0
        %v403 = vsel %vm380, %v321, 0
        %v406 = vsel %vm380, %v322, 0
        %v409 = vsel %vm380, %v323, 0
        %v412 = vsel %vm380, %v324, 0
        %v415 = vsel %vm380, %v325, 0
        %v418 = vsel %vm380, %v326, 0
        %v421 = vsel %vm380, %v327, 0
        %v424 = vsel %vm380, %v328, 0
        %v427 = vsel %vm380, %v329, 0
        %v430 = vsel %vm380, %v330, 0
        %v433 = vsel %vm380, %v331, 0
        %v436 = vsel %vm380, %v332, 0
        %v439 = vsel %vm380, %v333, 0
        %v442 = vsel %vm380, %v334, 0
        %v445 = vsel %vm380, %v335, 0
        %v448 = vsel %vm380, %v336, 0
        %v451 = vsel %vm380, %v337, 0
        %v454 = vsel %vm380, %v338, 0
        %v457 = vsel %vm380, %v339, 0
        %v460 = vsel %vm380, %v340, 0
        %v463 = vsel %vm380, %v341, 0
        %v466 = vsel %vm380, %v342, 0
        %v469 = vsel %vm380, %v343, 0
        %v472 = vsel %vm380, %v344, 0
        %v475 = vsel %vm380, %v345, 0
        %v478 = vsel %vm380, %v346, 0
        %v481 = vsel %vm380, %v347, 0
        %v484 = vsel %vm380, %v348, 0
        %v487 = vsel %vm380, %v349, 0
        %v490 = vsel %vm380, %v350, 0
        %v493 = vsel %vm380, %v351, 0
        %v496 = vsel %vm380, %v352, 0
        %v499 = vsel %vm380, %v353, 0
        %v502 = vsel %vm380, %v354, 0
        %v505 = vsel %vm380, %v355, 0
        %v508 = vsel %vm380, %v356, 0
        %v511 = vsel %vm380, %v357, 0
        %v514 = vsel %vm380, %v358, 0
        %v517 = vsel %vm380, %v359, 0
        %v520 = vsel %vm380, %v360, 0
        %v523 = vsel %vm380, %v361, 0
        %v526 = vsel %vm380, %v362, 0
        %v529 = vsel %vm380, %v363, 0
        %v532 = vsel %vm380, %v364, 0
        %v535 = vsel %vm380, %v365, 0
        %v538 = vsel %vm380, %v366, 0
        %v541 = vsel %vm380, %v367, 0
        %v544 = vsel %vm380, %v368, 0
        %v547 = vsel %vm380, %v369, 0
        %v550 = vsel %vm380, %v370, 0
        %v553 = vsel %vm380, %v371, 0
        %v556 = vsel %vm380, %v372, 0
        %v559 = vsel %vm380, %v373, 0
        %v562 = vsel %vm380, %v374, 0
        %v565 = vsel %vm380, %v375, 0
        %v568 = vsel %vm380, %v376, 0
        %v571 = vsel %vm380, %v377, 0
        %v574 = vsel %vm380, %v378, 0
        %v577 = vsel %vm380, %v379, 0
        %579 = vmatprep.subr.mxu0 0.0
        %580 = vmatpush1.xpose.msra.mxu0 %v388
        %581 = vmatprep.subr.mxu0 0.0
        %582 = vmatpush1.xpose.msra.mxu0 %v391
        %583 = vmatprep.subr.mxu0 0.0
        %584 = vmatpush1.xpose.msra.mxu0 %v394
        %585 = vmatprep.subr.mxu0 0.0
        %586 = vmatpush1.xpose.msra.mxu0 %v397
        %587 = vmatprep.subr.mxu0 0.0
        %588 = vmatpush1.xpose.msra.mxu0 %v400
        %589 = vmatprep.subr.mxu0 0.0
        %590 = vmatpush1.xpose.msra.mxu0 %v403
        %591 = vmatprep.subr.mxu0 0.0
        %592 = vmatpush1.xpose.msra.mxu0 %v406
        %593 = vmatprep.subr.mxu0 0.0
        %594 = vmatpush1.xpose.msra.mxu0 %v409
        %595 = vmatprep.subr.mxu0 0.0
        %596 = vmatpush1.xpose.msra.mxu0 %v412
        %597 = vmatprep.subr.mxu0 0.0
        %598 = vmatpush1.xpose.msra.mxu0 %v415
        %599 = vmatprep.subr.mxu0 0.0
        %600 = vmatpush1.xpose.msra.mxu0 %v418
        %601 = vmatprep.subr.mxu0 0.0
        %602 = vmatpush1.xpose.msra.mxu0 %v421
        %603 = vmatprep.subr.mxu0 0.0
        %604 = vmatpush1.xpose.msra.mxu0 %v424
        %605 = vmatprep.subr.mxu0 0.0
        %606 = vmatpush1.xpose.msra.mxu0 %v427
        %607 = vmatprep.subr.mxu0 0.0
        %608 = vmatpush1.xpose.msra.mxu0 %v430
        %609 = vmatprep.subr.mxu0 0.0
        %610 = vmatpush1.xpose.msra.mxu0 %v433
        %611 = vmatprep.subr.mxu0 0.0
        %612 = vmatpush1.xpose.msra.mxu0 %v436
        %613 = vmatprep.subr.mxu0 0.0
        %614 = vmatpush1.xpose.msra.mxu0 %v439
        %615 = vmatprep.subr.mxu0 0.0
        %616 = vmatpush1.xpose.msra.mxu0 %v442
        %617 = vmatprep.subr.mxu0 0.0
        %618 = vmatpush1.xpose.msra.mxu0 %v445
        %619 = vmatprep.subr.mxu0 0.0
        %620 = vmatpush1.xpose.msra.mxu0 %v448
        %621 = vmatprep.subr.mxu0 0.0
        %622 = vmatpush1.xpose.msra.mxu0 %v451
        %623 = vmatprep.subr.mxu0 0.0
        %624 = vmatpush1.xpose.msra.mxu0 %v454
        %625 = vmatprep.subr.mxu0 0.0
        %626 = vmatpush1.xpose.msra.mxu0 %v457
        %627 = vmatprep.subr.mxu0 0.0
        %628 = vmatpush1.xpose.msra.mxu0 %v460
        %629 = vmatprep.subr.mxu0 0.0
        %630 = vmatpush1.xpose.msra.mxu0 %v463
        %631 = vmatprep.subr.mxu0 0.0
        %632 = vmatpush1.xpose.msra.mxu0 %v466
        %633 = vmatprep.subr.mxu0 0.0
        %634 = vmatpush1.xpose.msra.mxu0 %v469
        %635 = vmatprep.subr.mxu0 0.0
        %636 = vmatpush1.xpose.msra.mxu0 %v472
        %637 = vmatprep.subr.mxu0 0.0
        %638 = vmatpush1.xpose.msra.mxu0 %v475
        %639 = vmatprep.subr.mxu0 0.0
        %640 = vmatpush1.xpose.msra.mxu0 %v478
        %641 = vmatprep.subr.mxu0 0.0
        %642 = vmatpush1.xpose.msra.mxu0 %v481
        %643 = vmatprep.mubr.f32.mxu0 0.0
        %644 = vmatmul.mubr.f32.gmra.mrb[0].mxu0 %v382
        %v645 = vpop.f32.mrb[0].mxu0
        %v646 = vadd.f32 0.0, %v645
        %v647 = vpop.f32.mrb[0].mxu0
        %v648 = vadd.f32 0.0, %v647
        %649 = vmatprep.mubr.f32.mxu0 0.0
        %650 = vmatmul.mubr.f32.gmra.mrb[0].mxu0 %v385
        %v651 = vpop.f32.mrb[0].mxu0
        %v652 = vadd.f32 0.0, %v651
        %v653 = vpop.f32.mrb[0].mxu0
        %v654 = vadd.f32 0.0, %v653
        %655 = vdwg.mxu0
        %656 = vmatprep.subr.mxu0 0.0
        %657 = vmatpush1.xpose.msra.mxu0 %v484
        %658 = vmatprep.subr.mxu0 0.0
        %659 = vmatpush1.xpose.msra.mxu0 %v487
        %660 = vmatprep.subr.mxu0 0.0
        %661 = vmatpush1.xpose.msra.mxu0 %v490
        %662 = vmatprep.subr.mxu0 0.0
        %663 = vmatpush1.xpose.msra.mxu0 %v493
        %664 = vmatprep.subr.mxu0 0.0
        %665 = vmatpush1.xpose.msra.mxu0 %v496
        %666 = vmatprep.subr.mxu0 0.0
        %667 = vmatpush1.xpose.msra.mxu0 %v499
        %668 = vmatprep.subr.mxu0 0.0
        %669 = vmatpush1.xpose.msra.mxu0 %v502
        %670 = vmatprep.subr.mxu0 0.0
        %671 = vmatpush1.xpose.msra.mxu0 %v505
        %672 = vmatprep.subr.mxu0 0.0
        %673 = vmatpush1.xpose.msra.mxu0 %v508
        %674 = vmatprep.subr.mxu0 0.0
        %675 = vmatpush1.xpose.msra.mxu0 %v511
        %676 = vmatprep.subr.mxu0 0.0
        %677 = vmatpush1.xpose.msra.mxu0 %v514
        %678 = vmatprep.subr.mxu0 0.0
        %679 = vmatpush1.xpose.msra.mxu0 %v517
        %680 = vmatprep.subr.mxu0 0.0
        %681 = vmatpush1.xpose.msra.mxu0 %v520
        %682 = vmatprep.subr.mxu0 0.0
        %683 = vmatpush1.xpose.msra.mxu0 %v523
        %684 = vmatprep.subr.mxu0 0.0
        %685 = vmatpush1.xpose.msra.mxu0 %v526
        %686 = vmatprep.subr.mxu0 0.0
        %687 = vmatpush1.xpose.msra.mxu0 %v529
        %688 = vmatprep.subr.mxu0 0.0
        %689 = vmatpush1.xpose.msra.mxu0 %v532
        %690 = vmatprep.subr.mxu0 0.0
        %691 = vmatpush1.xpose.msra.mxu0 %v535
        %692 = vmatprep.subr.mxu0 0.0
        %693 = vmatpush1.xpose.msra.mxu0 %v538
        %694 = vmatprep.subr.mxu0 0.0
        %695 = vmatpush1.xpose.msra.mxu0 %v541
        %696 = vmatprep.subr.mxu0 0.0
        %697 = vmatpush1.xpose.msra.mxu0 %v544
        %698 = vmatprep.subr.mxu0 0.0
        %699 = vmatpush1.xpose.msra.mxu0 %v547
        %700 = vmatprep.subr.mxu0 0.0
        %701 = vmatpush1.xpose.msra.mxu0 %v550
        %702 = vmatprep.subr.mxu0 0.0
        %703 = vmatpush1.xpose.msra.mxu0 %v553
        %704 = vmatprep.subr.mxu0 0.0
        %705 = vmatpush1.xpose.msra.mxu0 %v556
        %706 = vmatprep.subr.mxu0 0.0
        %707 = vmatpush1.xpose.msra.mxu0 %v559
        %708 = vmatprep.subr.mxu0 0.0
        %709 = vmatpush1.xpose.msra.mxu0 %v562
        %710 = vmatprep.subr.mxu0 0.0
        %711 = vmatpush1.xpose.msra.mxu0 %v565
        %712 = vmatprep.subr.mxu0 0.0
        %713 = vmatpush1.xpose.msra.mxu0 %v568
        %714 = vmatprep.subr.mxu0 0.0
        %715 = vmatpush1.xpose.msra.mxu0 %v571
        %716 = vmatprep.subr.mxu0 0.0
        %717 = vmatpush1.xpose.msra.mxu0 %v574
        %718 = vmatprep.subr.mxu0 0.0
        %719 = vmatpush1.xpose.msra.mxu0 %v577
        %720 = vmatprep.mubr.f32.mxu0 0.0
        %721 = vmatmul.mubr.f32.gmra.mrb[0].mxu0 %v382
        %v722 = vpop.f32.mrb[0].mxu0
        %v723 = vadd.f32 0.0, %v722
        %v724 = vpop.f32.mrb[0].mxu0
        %v725 = vadd.f32 0.0, %v724
        %726 = vmatprep.mubr.f32.mxu0 0.0
        %727 = vmatmul.mubr.f32.gmra.mrb[0].mxu0 %v385
        %v728 = vpop.f32.mrb[0].mxu0
        %v729 = vadd.f32 0.0, %v728
        %v730 = vpop.f32.mrb[0].mxu0
        %v731 = vadd.f32 0.0, %v730
        %732 = vdwg.mxu0
        %v733 = vld [vmem:[#allocation5] sm:$0xf]
        %s734 = smul.u32 %s22, 512
        %v735 = vstv %s734
        %v736 = vadd.s32 %v733, %v735
        %vm737 = vcmp.lt.s32.totalorder %v736, 640
        %v738 = vsel %vm737, 1, 0
        %v739 = vlaneseq
        %v740 = vshrl.u32 %v739, 7
        %v741 = vsub.s32 0, %v740
        %v742 = vrot.slane %v738, %v741
        %v743 = vlaneseq
        %v744 = vshrl.u32 %v743, 7
        %v745 = vsub.s32 1, %v744
        %v746 = vrot.slane %v738, %v745
        %v747 = vlaneseq
        %v748 = vshrl.u32 %v747, 7
        %v749 = vsub.s32 2, %v748
        %v750 = vrot.slane %v738, %v749
        %v751 = vlaneseq
        %v752 = vshrl.u32 %v751, 7
        %v753 = vsub.s32 3, %v752
        %v754 = vrot.slane %v738, %v753
        %vm755 = vcmp.eq.s32.totalorder %v742, 1
        %vm756 = vcmp.eq.s32.totalorder %v746, 1
        %vm757 = vcmp.eq.s32.totalorder %v750, 1
        %vm758 = vcmp.eq.s32.totalorder %v754, 1
        %v759 = vsel %vm755, %v646, -inf
        %v760 = vsel %vm756, %v648, -inf
        %v761 = vsel %vm757, %v723, -inf
        %v762 = vsel %vm758, %v725, -inf
        %v763 = vsel %vm755, %v652, -inf
        %v764 = vsel %vm756, %v654, -inf
        %v765 = vsel %vm757, %v729, -inf
        %v766 = vsel %vm758, %v731, -inf
        %v767 = vmax.f32 %v759, %v761
        %v768 = vmax.f32 %v760, %v762
        %v769 = vmax.f32 %v767, %v768
        %770 = vmax.xlane.f32.xlu0 %v769
        %v771 = vpop.xlane.xlu0 %770
        %v772 = vmax.f32 %v763, %v765
        %v773 = vmax.f32 %v764, %v766
        %v774 = vmax.f32 %v772, %v773
        %775 = vmax.xlane.f32.xlu0 %v774
        %v776 = vpop.xlane.xlu0 %775
        %vm777 = vcmp.eq.f32.partialorder %v759, %v771
        %vm778 = vcmp.eq.f32.partialorder %v760, %v771
        %vm779 = vcmp.eq.f32.partialorder %v761, %v771
        %vm780 = vcmp.eq.f32.partialorder %v762, %v771
        %vm781 = vcmp.eq.f32.partialorder %v763, %v776
        %vm782 = vcmp.eq.f32.partialorder %v764, %v776
        %vm783 = vcmp.eq.f32.partialorder %v765, %v776
        %vm784 = vcmp.eq.f32.partialorder %v766, %v776
        %v785 = vlaneseq
        %v786 = vshrl.u32 %v785, 7
        %v787 = vsub.s32 0, %v786
        %v788 = vrot.slane %v736, %v787
        %v789 = vlaneseq
        %v790 = vshrl.u32 %v789, 7
        %v791 = vsub.s32 1, %v790
        %v792 = vrot.slane %v736, %v791
        %v793 = vlaneseq
        %v794 = vshrl.u32 %v793, 7
        %v795 = vsub.s32 2, %v794
        %v796 = vrot.slane %v736, %v795
        %v797 = vlaneseq
        %v798 = vshrl.u32 %v797, 7
        %v799 = vsub.s32 3, %v798
        %v800 = vrot.slane %v736, %v799
        %v801 = vsel %vm777, %v788, 2147483647
        %v802 = vsel %vm778, %v792, 2147483647
        %v803 = vsel %vm779, %v796, 2147483647
        %v804 = vsel %vm780, %v800, 2147483647
        %v805 = vsel %vm781, %v788, 2147483647
        %v806 = vsel %vm782, %v792, 2147483647
        %v807 = vsel %vm783, %v796, 2147483647
        %v808 = vsel %vm784, %v800, 2147483647
        %vm809 = vcmp.lt.s32.totalorder %v801, %v803
        %v810 = vsel %vm809, %v801, %v803
        %vm811 = vcmp.lt.s32.totalorder %v802, %v804
        %v812 = vsel %vm811, %v802, %v804
        %vm813 = vcmp.lt.s32.totalorder %v810, %v812
        %v814 = vsel %vm813, %v810, %v812
        %v815 = vand.u32 %v814, 65535
        %v816 = vshra.s32 %v814, 16
        %v817 = vcvt.s32.f32 %v815
        %v818 = vcvt.s32.f32 %v816
        %819 = vmin.xlane.f32.xlu0 %v818
        %v820 = vpop.xlane.xlu0 %819
        %vm821 = vcmp.eq.f32.partialorder %v818, %v820
        %v822 = vsel %vm821, %v817, inf
        %823 = vmin.xlane.f32.xlu0 %v822
        %v824 = vpop.xlane.xlu0 %823
        %v825 = vcvt.f32.s32 %v824
        %v826 = vcvt.f32.s32 %v820
        %v827 = vshll.u32 %v826, 16
        %v828 = vadd.s32 %v827, %v825
        %vm829 = vcmp.lt.s32.totalorder %v805, %v807
        %v830 = vsel %vm829, %v805, %v807
        %vm831 = vcmp.lt.s32.totalorder %v806, %v808
        %v832 = vsel %vm831, %v806, %v808
        %vm833 = vcmp.lt.s32.totalorder %v830, %v832
        %v834 = vsel %vm833, %v830, %v832
        %v835 = vand.u32 %v834, 65535
        %v836 = vshra.s32 %v834, 16
        %v837 = vcvt.s32.f32 %v835
        %v838 = vcvt.s32.f32 %v836
        %839 = vmin.xlane.f32.xlu0 %v838
        %v840 = vpop.xlane.xlu0 %839
        %vm841 = vcmp.eq.f32.partialorder %v838, %v840
        %v842 = vsel %vm841, %v837, inf
        %843 = vmin.xlane.f32.xlu0 %v842
        %v844 = vpop.xlane.xlu0 %843
        %v845 = vcvt.f32.s32 %v844
        %v846 = vcvt.f32.s32 %v840
        %v847 = vshll.u32 %v846, 16
        %v848 = vadd.s32 %v847, %v845
        %v849 = vld [vmem:[#allocation3] sm:$0xff]
        %v850 = vld [vmem:[#allocation3 + $0x8] sm:$0xff]
        %vm851 = vcmp.gt.f32.partialorder %v771, %v849
        %vm852 = vcmp.gt.f32.partialorder %v776, %v850
        %v853 = vld [vmem:[#allocation4] sm:$0xff]
        %v854 = vld [vmem:[#allocation4 + $0x8] sm:$0xff]
        %v855 = vsel %vm851, %v828, %v853
        %v856 = vsel %vm852, %v848, %v854
        %vm857 = vcmask 7168
        %858 = vst.msk [vmem:[#allocation4] sm:$0xff] %vm857, %v855
        %859 = vst.msk [vmem:[#allocation4 + $0x8] sm:$0xff] %vm857, %v856
        %v860 = vld [vmem:[#allocation3] sm:$0xff]
        %v861 = vld [vmem:[#allocation3 + $0x8] sm:$0xff]
        %v862 = vsel %vm851, %v771, %v860
        %v863 = vsel %vm852, %v776, %v861
        %864 = vst.msk [vmem:[#allocation3] sm:$0xff] %vm857, %v862
        %865 = vst.msk [vmem:[#allocation3 + $0x8] sm:$0xff] %vm857, %v863
        %p866 = scmp.eq.s32.totalorder %s22, 1
        // Predicated region
        $region49: #{tpu_custom_call.1} parent=31 // pred_check
          %p867 = pneg %p866
        $region50: #{tpu_custom_call.1} parent=31 // pred_check_branch
          %869 = sbr.rel (%p867) target = $region52
        $region51: #{tpu_custom_call.1} parent=31 // pred_region
          %v870 = vld [vmem:[#allocation4] sm:$0xff]
          %v871 = vld [vmem:[#allocation4 + $0x8] sm:$0xff]
          %872 = vst.msk [vmem:[#allocation12] sm:$0xff] %vm857, %v870
          %873 = vst.msk [vmem:[#allocation12 + $0x8] sm:$0xff] %vm857, %v871
        $region52: #{tpu_custom_call.1} parent=31 // pred_fallthru
          _
        // Predicated region
        $region53: #{tpu_custom_call.1} parent=31 // pred_check
          %p874 = pneg %p120
        $region54: #{tpu_custom_call.1} parent=31 // pred_check_branch
          %876 = sbr.rel (%p874) target = $region56
        $region55: #{tpu_custom_call.1} parent=31 // pred_region
          %s877 = smul.u32 2, %s21
          %s879 = ssub.s32 256, 256
          %880 = vsyncadd [#allocation8], %s879
          %s881 = smul.addr %s877, 128
          %s882 = scalar_lea.hbm %s3, %s881
          %s883 = sshll.u32 [#allocation12], 4
          %s884 = int_to_ptr.vmem [resolvable:$true] %s883
          %889 = dma.vmem_to_hbm [thread:$0]  %s884, 256, %s882, [#allocation8], 128, 128, 8
        $region56: #{tpu_custom_call.1} parent=31 // pred_fallthru
          _
        // Predicated region
        $region57: #{tpu_custom_call.1} parent=31 // pred_check
          %p890 = pneg %p120
        $region58: #{tpu_custom_call.1} parent=31 // pred_check_branch
          %892 = sbr.rel (%p890) target = $region60
        $region59: #{tpu_custom_call.1} parent=31 // pred_region
          %893 = dma.done [#allocation8], 256
        $region60: #{tpu_custom_call.1} parent=31 // pred_fallthru
          _
      $region32: #{tpu_custom_call.1} parent=5 // pred_fallthru
        _
      %p894 = scmp.le.s32.totalorder 2, %s12
      // Predicated region
      $region61: #{tpu_custom_call.1} parent=5 // pred_check
        %p895 = pneg %p894
      $region62: #{tpu_custom_call.1} parent=5 // pred_check_branch
        %897 = sbr.rel (%p895) target = $region64
      $region63: #{tpu_custom_call.1} parent=5 // pred_region
        %s898 = ssub.s32 %s12, 2
      $region64: #{tpu_custom_call.1} parent=5 // pred_fallthru
        _
    $region6: #{tpu_custom_call.1} parent=1 // loop_footer
      %s16 = sadd.s32 1, %s12
    $region7: #{tpu_custom_call.1} parent=1 // loop_footer_branch
      %11 = sbr.rel target = $region3
    $region8: #{tpu_custom_call.1} parent=1 // loop_exit
      _
    %899 = vsyncpa [#allocation7], 1
    %s900 = scalar_lea.sflag [#allocation7], 1
    %901 = vsyncpa %s900, 1
    %902 = vsyncpa [#allocation10], 1
    %903 = vsyncpa [#allocation8], 1
    %s904 = scalar_lea.sflag [#allocation8], 1
    %905 = vsyncpa %s904, 1

</llo_original>
